<compile_context>
chip_gen: v7x
topology: tpu7x:2x2x1
jax: 0.10.0
libtpu: 0.0.40
codegen_flags: <defaults>
</compile_context>

<pallas_src>
import jax
import jax.numpy as jnp
from jax.experimental import pallas as pl
from jax.experimental.pallas import tpu as pltpu

FEATS = 1000                   # inception_v3 output feature size
OUT = 2                        # fc output size
FEATS_PAD = 1024               # 1000 padded to a multiple of 128 (lane-dense)
OUT_PAD = 128                  # 2 padded to a full lane slab (unmasked stores)
N_COL = 2                      # FEATS_PAD column halves -> parallel axis (v7x 2 TCs)
COL_PAD = FEATS_PAD // N_COL   # 512
TK_MAX = 4096                  # default K tile (bf16 wb tile = 4 MiB, 8 MiB dbl-buf)
TM_MAX = 256                   # batch tile cap (keeps x dbl-buf + acc bounded)


def _cdiv(a, b):
    return (a + b - 1) // b


def _round_up(x, m):
    return _cdiv(x, m) * m


def _pad_axis(a, target, axis):
    pad = target - a.shape[axis]
    if pad == 0:
        return a
    widths = [(0, 0)] * a.ndim
    widths[axis] = (0, pad)
    return jnp.pad(a, widths)


def _k_tiling(d_in, tk_max):
    """Pad d_in minimally (multiple of 256) and pick tk dividing the result."""
    d256 = _round_up(d_in, 256)
    k_steps = max(1, _cdiv(d256, tk_max))
    tk = _round_up(_cdiv(d256, k_steps), 256)
    return tk, k_steps, tk * k_steps


def _m_tiling(n, tm_max):
    """Pad n minimally (multiple of 8) and pick tm dividing the result."""
    n8 = _round_up(n, 8)
    m_steps = max(1, _cdiv(n8, tm_max))
    tm = _round_up(_cdiv(n8, m_steps), 8)
    return tm, m_steps, tm * m_steps


def inception_head_kernel(x_ref, wb_ref, bb_ref, wfc_ref, o_ref, acc_ref):
    """Grid (j, m, k): acc += x_tile @ wb_tile for column half j.
    Last K step: relu(acc + bb_half) @ wfc_half -> partial logits (bias and
    sigmoid are applied in the wrapper after summing the two halves)."""
    k = pl.program_id(2)

    @pl.when(k == 0)
    def _init():
        acc_ref[...] = jnp.zeros_like(acc_ref)

    # bf16 operands streamed from HBM, f32 accumulation on the MXU.
    acc_ref[...] += jnp.dot(x_ref[...], wb_ref[...],
                            preferred_element_type=jnp.float32)

    @pl.when(k == pl.num_programs(2) - 1)
    def _finalize():
        feats = acc_ref[...] + bb_ref[...]                   # (tm, COL_PAD) f32
        h = jnp.maximum(feats, 0.0)                          # F.relu
        o_ref[...] = jnp.dot(h, wfc_ref[...],
                             preferred_element_type=jnp.float32)


def make_inception_forward(wb, bb, wfc, bfc, *, tk_max=TK_MAX, tm_max=TM_MAX):
    """One-time weight prep (pad + cast, hoisted out of the per-call path).
    Returns a jitted forward(x) callable."""
    d_in = wb.shape[0]
    tk, k_steps, d_in_pad = _k_tiling(d_in, tk_max)

    # Zero padding keeps the matmuls exact: padded d_in rows contribute 0,
    # padded FEATS lanes see zero weight/bias on both sides of the relu,
    # padded OUT lanes are sliced off after the sigmoid.
    wb_p = _pad_axis(_pad_axis(wb.astype(jnp.bfloat16), d_in_pad, 0), FEATS_PAD, 1)
    bb_p = _pad_axis(bb.astype(jnp.float32).reshape(1, -1), FEATS_PAD, 1)
    wfc_p = _pad_axis(_pad_axis(wfc.astype(jnp.float32), FEATS_PAD, 0), OUT_PAD, 1)
    bfc_p = _pad_axis(bfc.astype(jnp.float32).reshape(1, -1), OUT_PAD, 1)
    params = (wb_p, bb_p, wfc_p, bfc_p)

    def _forward(params, x):
        wb_p, bb_p, wfc_p, bfc_p = params
        n = x.shape[0]
        d = 1
        for s in x.shape[1:]:
            d *= s
        if d != d_in:
            raise ValueError(f"x features {d} != weight d_in {d_in}")
        tm, m_steps, n_pad = _m_tiling(n, tm_max)

        # Per-call: only x is padded / cast.
        x_p = x.reshape(n, d_in).astype(jnp.bfloat16)
        x_p = _pad_axis(_pad_axis(x_p, d_in_pad, 1), n_pad, 0)

        bytes_accessed = (N_COL * x_p.size * 2 + wb_p.size * 2
                          + N_COL * bb_p.size * 4 + wfc_p.size * 4
                          + n_pad * N_COL * OUT_PAD * 4)
        cost = pl.CostEstimate(
            flops=2 * n_pad * d_in_pad * FEATS_PAD
                  + 2 * n_pad * FEATS_PAD * OUT_PAD,
            transcendentals=0,
            bytes_accessed=bytes_accessed,
        )

        partials = pl.pallas_call(
            inception_head_kernel,
            out_shape=jax.ShapeDtypeStruct((n_pad, N_COL * OUT_PAD), jnp.float32),
            grid_spec=pltpu.PrefetchScalarGridSpec(
                num_scalar_prefetch=0,
                grid=(N_COL, m_steps, k_steps),
                in_specs=[
                    pl.BlockSpec((tm, tk), lambda j, m, k: (m, k)),            # x tile
                    pl.BlockSpec((tk, COL_PAD), lambda j, m, k: (k, j)),       # wb (streamed)
                    pl.BlockSpec((1, COL_PAD), lambda j, m, k: (0, j)),        # bb half
                    pl.BlockSpec((COL_PAD, OUT_PAD), lambda j, m, k: (j, 0)),  # wfc half
                ],
                out_specs=pl.BlockSpec((tm, OUT_PAD), lambda j, m, k: (m, j)),
                scratch_shapes=[pltpu.VMEM((tm, COL_PAD), jnp.float32)],
            ),
            compiler_params=pltpu.CompilerParams(
                # j (feature-column half) and m (batch tile) can shard across
                # the two TensorCores on v7x; k is the reduction axis.
                dimension_semantics=("parallel", "parallel", "arbitrary"),
                vmem_limit_bytes=32 << 20,   # safe on v5e/v6e/v7x
            ),
            cost_estimate=cost,
        )(x_p, wb_p, bb_p, wfc_p)

        # Sum the two column-half partial logits, add fc bias, sigmoid.
        logits = partials.reshape(n_pad, N_COL, OUT_PAD).sum(axis=1) + bfc_p
        return jax.nn.sigmoid(logits)[:n, :OUT]

    fwd = jax.jit(_forward)
    return lambda x: fwd(params, x)


if __name__ == "__main__":
    # Small deterministic example: batch=2, 3-channel 16x16 images (NCHW).
    key = jax.random.PRNGKey(0)
    kx, kwb, kbb, kwfc, kbfc = jax.random.split(key, 5)

    N, C, H, W = 2, 3, 16, 16
    D_IN = C * H * W

    x = jax.random.normal(kx, (N, C, H, W), dtype=jnp.float32)

    # Deterministic synthetic parameters (stand-in backbone proj + real head).
    wb = 0.02 * jax.random.normal(kwb, (D_IN, FEATS), dtype=jnp.float32)
    bb = 0.02 * jax.random.normal(kbb, (FEATS,), dtype=jnp.float32)
    wfc = 0.05 * jax.random.normal(kwfc, (FEATS, OUT), dtype=jnp.float32)
    bfc = 0.05 * jax.random.normal(kbfc, (OUT,), dtype=jnp.float32)

    # tk_max=256 forces a multi-step K grid (3 steps for D_IN=768) so the
    # accumulator / pipeline path is exercised even at toy sizes; real
    # inception-sized inputs use the 4096 default.
    forward = make_inception_forward(wb, bb, wfc, bfc, tk_max=256)
    out = jax.block_until_ready(forward(x))

    # Pure-JAX reference for the same stand-in graph (same bf16 streaming).
    x_flat = x.reshape(N, D_IN)
    feats_ref = jnp.dot(x_flat.astype(jnp.bfloat16), wb.astype(jnp.bfloat16),
                        preferred_element_type=jnp.float32) + bb.reshape(1, -1)
    ref = jax.nn.sigmoid(jnp.maximum(feats_ref, 0.0) @ wfc + bfc.reshape(1, -1))

    assert out.shape == (N, OUT)
    assert jnp.allclose(out, ref, atol=2e-3, rtol=2e-3), (out, ref)

    print("KERNEL_OK")
</pallas_src>

<mosaic_0001>
module attributes {stable_mosaic.version = 11 : i64} {
  func.func @inception_head_kernel(%arg0: i32, %arg1: i32, %arg2: i32, %arg3: memref<8x256xbf16, #tpu.memory_space<vmem>>, %arg4: memref<256x512xbf16, #tpu.memory_space<vmem>>, %arg5: memref<1x512xf32, #tpu.memory_space<vmem>>, %arg6: memref<512x128xf32, #tpu.memory_space<vmem>>, %arg7: memref<8x128xf32, #tpu.memory_space<vmem>>, %arg8: memref<8x512xf32, #tpu.memory_space<vmem>>) attributes {dimension_semantics = [#tpu.dimension_semantics<parallel>, #tpu.dimension_semantics<parallel>, #tpu.dimension_semantics<arbitrary>], iteration_bounds = array<i64: 2, 1, 3>, scalar_prefetch = 0 : i64, scratch_operands = 1 : i64, tpu.core_type = #tpu.core_type<tc>, window_params = [{transform_indices = @transform_0, window_bounds = array<i64: 8, 256>}, {transform_indices = @transform_1, window_bounds = array<i64: 256, 512>}, {transform_indices = @transform_2, window_bounds = array<i64: 1, 512>}, {transform_indices = @transform_3, window_bounds = array<i64: 512, 128>}, {transform_indices = @transform_4, window_bounds = array<i64: 8, 128>}]} {
    %c0_i32 = arith.constant 0 : i32
    %0 = arith.cmpi eq, %arg2, %c0_i32 : i32
    %1 = arith.extui %0 : i1 to i32
    %c0_i32_0 = arith.constant 0 : i32
    %2 = arith.cmpi ne, %1, %c0_i32_0 : i32
    scf.if %2 {
      %cst_9 = arith.constant 0.000000e+00 : f32
      %12 = vector.broadcast %cst_9 : f32 to vector<8x512xf32>
      %c0_10 = arith.constant 0 : index
      %c0_11 = arith.constant 0 : index
      %13 = vector.load %arg8[%c0_10, %c0_11] : memref<8x512xf32, #tpu.memory_space<vmem>>, vector<8x512xf32>
      tpu.vector_store %arg8[%c0_10, %c0_11], %12 {strides = array<i32>} : memref<8x512xf32, #tpu.memory_space<vmem>>, vector<8x512xf32>,
    } else {
    }
    %c0 = arith.constant 0 : index
    %c0_1 = arith.constant 0 : index
    %3 = vector.load %arg8[%c0, %c0_1] : memref<8x512xf32, #tpu.memory_space<vmem>>, vector<8x512xf32>
    %c0_2 = arith.constant 0 : index
    %c0_3 = arith.constant 0 : index
    %4 = vector.load %arg3[%c0_2, %c0_3] : memref<8x256xbf16, #tpu.memory_space<vmem>>, vector<8x256xbf16>
    %c0_4 = arith.constant 0 : index
    %c0_5 = arith.constant 0 : index
    %5 = vector.load %arg4[%c0_4, %c0_5] : memref<256x512xbf16, #tpu.memory_space<vmem>>, vector<256x512xbf16>
    %cst = arith.constant dense<0.000000e+00> : vector<8x512xf32>
    %6 = tpu.matmul %4, %5, %cst {dimension_numbers = #tpu.dot_dimension_numbers<[1], [0], [0], [1], [0, 0, 1, 1], [], []>} : vector<8x256xbf16>, vector<256x512xbf16>, vector<8x512xf32> -> vector<8x512xf32>
    %7 = arith.addf %3, %6 : vector<8x512xf32>
    %c0_6 = arith.constant 0 : index
    %c0_7 = arith.constant 0 : index
    %8 = vector.load %arg8[%c0_6, %c0_7] : memref<8x512xf32, #tpu.memory_space<vmem>>, vector<8x512xf32>
    tpu.vector_store %arg8[%c0_6, %c0_7], %7 {strides = array<i32>} : memref<8x512xf32, #tpu.memory_space<vmem>>, vector<8x512xf32>,
    %c2_i32 = arith.constant 2 : i32
    %9 = arith.cmpi eq, %arg2, %c2_i32 : i32
    %10 = arith.extui %9 : i1 to i32
    %c0_i32_8 = arith.constant 0 : i32
    %11 = arith.cmpi ne, %10, %c0_i32_8 : i32
    scf.if %11 {
      %c0_9 = arith.constant 0 : index
      %c0_10 = arith.constant 0 : index
      %12 = vector.load %arg8[%c0_9, %c0_10] : memref<8x512xf32, #tpu.memory_space<vmem>>, vector<8x512xf32>
      %c0_11 = arith.constant 0 : index
      %c0_12 = arith.constant 0 : index
      %13 = vector.load %arg5[%c0_11, %c0_12] : memref<1x512xf32, #tpu.memory_space<vmem>>, vector<1x512xf32>
      %14 = vector.broadcast %13 : vector<1x512xf32> to vector<8x512xf32>
      %15 = arith.addf %12, %14 : vector<8x512xf32>
      %cst_13 = arith.constant 0.000000e+00 : f32
      %16 = vector.broadcast %cst_13 : f32 to vector<8x512xf32>
      %17 = arith.maximumf %15, %16 : vector<8x512xf32>
      %c0_14 = arith.constant 0 : index
      %c0_15 = arith.constant 0 : index
      %18 = vector.load %arg6[%c0_14, %c0_15] : memref<512x128xf32, #tpu.memory_space<vmem>>, vector<512x128xf32>
      %cst_16 = arith.constant dense<0.000000e+00> : vector<8x128xf32>
      %19 = tpu.matmul %17, %18, %cst_16 {dimension_numbers = #tpu.dot_dimension_numbers<[1], [0], [0], [1], [0, 0, 1, 1], [], []>} : vector<8x512xf32>, vector<512x128xf32>, vector<8x128xf32> -> vector<8x128xf32>
      %c0_17 = arith.constant 0 : index
      %c0_18 = arith.constant 0 : index
      %20 = vector.load %arg7[%c0_17, %c0_18] : memref<8x128xf32, #tpu.memory_space<vmem>>, vector<8x128xf32>
      tpu.vector_store %arg7[%c0_17, %c0_18], %19 {strides = array<i32>} : memref<8x128xf32, #tpu.memory_space<vmem>>, vector<8x128xf32>,
    } else {
    }
    return
  }
  func.func @transform_0(%arg0: i32, %arg1: i32, %arg2: i32) -> (i32, i32) {
    %c0_i32 = arith.constant 0 : i32
    return %arg1, %arg2 : i32, i32
  }
  func.func @transform_1(%arg0: i32, %arg1: i32, %arg2: i32) -> (i32, i32) {
    %c0_i32 = arith.constant 0 : i32
    return %arg2, %arg0 : i32, i32
  }
  func.func @transform_2(%arg0: i32, %arg1: i32, %arg2: i32) -> (i32, i32) {
    %c0_i32 = arith.constant 0 : i32
    %c0_i32_0 = arith.constant 0 : i32
    return %c0_i32, %arg0 : i32, i32
  }
  func.func @transform_3(%arg0: i32, %arg1: i32, %arg2: i32) -> (i32, i32) {
    %c0_i32 = arith.constant 0 : i32
    %c0_i32_0 = arith.constant 0 : i32
    return %arg0, %c0_i32 : i32, i32
  }
  func.func @transform_4(%arg0: i32, %arg1: i32, %arg2: i32) -> (i32, i32) {
    %c0_i32 = arith.constant 0 : i32
    return %arg1, %arg0 : i32, i32
  }
}

</mosaic_0001>

<llo_original>
// kernel: _forward.1
$region0: #{_forward.1}
  #allocation0 [shape = 'u32[]', space=smem, size = 0x4, offset = 0x4, fixed_abs, tag = 'smem constant byte address 0x4 - core index']
  #allocation1 [shape = 'u32[144,128]{1,0:T(1,128)}', space=vmem, size = 0x12000, scoped, tag = 'internal scratch']
  #allocation2 [shape = 'f32[8,512]{1,0:T(8,128)}', space=vmem, size = 0x4000, scoped, tag = 'scratch operand']
  %s0 = inlined_call_operand.vmem [shape: bf16[8,768], index: 0, kind: input, shape index: {}]
  %s1 = inlined_call_operand.hbm [shape: bf16[768,1024], index: 1, kind: input, shape index: {}]
  %s2 = inlined_call_operand.hbm [shape: f32[1,1024], index: 2, kind: input, shape index: {}]
  %s3 = inlined_call_operand.hbm [shape: f32[1024,128], index: 3, kind: input, shape index: {}]
  %s4 = inlined_call_operand.vmem [shape: f32[8,256], index: 4, kind: output, shape index: {}]
  %s5 = sld [smem:[#allocation0]]
  $region69: #{_forward.1} parent=0
    _
  %s7 = ssub.s32 1, %s5
  %s8 = scalar_select 0, %s7, %s5
  $region1: #{_forward.1} parent=0
    #allocation3 [shape = 'u8[524288]{0}', space=vmem, size = 0x80000, scoped, tag = 'input window, operand 1']
    #allocation4 [shape = 's32[2]{0}', space=sflag, size = 0x8, scoped, tag = 'scoped memory for _forward.1']
    #allocation5 [shape = 'u8[4096]{0}', space=vmem, size = 0x1000, scoped, tag = 'input window, operand 2']
    #allocation6 [shape = 's32[2]{0}', space=sflag, size = 0x8, scoped, tag = 'scoped memory for _forward.1']
    #allocation7 [shape = 'u8[524288]{0}', space=vmem, size = 0x80000, scoped, tag = 'input window, operand 3']
    %9 = vsyncpa [#allocation4], 0
    %s10 = scalar_lea.sflag [#allocation4], 1
    %11 = vsyncpa %s10, 0
    %12 = vsyncpa [#allocation6], 0
    %s13 = scalar_lea.sflag [#allocation6], 1
    %14 = vsyncpa %s13, 0
    loop: start=0, step=1, limit=8
    $region2: #{_forward.1} parent=1 // loop_pre_header
      _
    $region3: #{_forward.1} parent=1 // loop_header
      %s16 = sphi 0, %s20
      %p17 = scmp.ge.s32.totalorder %s16, 8
      %s23 = sphi 0, %s42
      %s24 = sphi 0, %s38
      %s25 = sphi 0, %s34
      %s26 = sphi 0, %s23
      %s27 = sphi 0, %s24
      %s28 = sphi 0, %s25
      %s29 = sphi 0, %s26
      %s30 = sphi 0, %s27
      %s31 = sphi 0, %s28
      %s47 = sphi 0, %s49
      %s50 = sphi 0, %s47
      %s51 = sphi 0, %s50
      %s67 = sphi 0, %s51
      %s75 = sphi 0, %s77
      %s78 = sphi 0, %s75
      %s79 = sphi 0, %s78
      %s95 = sphi 0, %s79
      %s101 = sphi 0, %s103
      %s104 = sphi 0, %s101
      %s105 = sphi 0, %s104
      %s121 = sphi 0, %s105
      %s127 = sphi 0, %s129
      %s130 = sphi 0, %s127
      %s131 = sphi 0, %s130
      %s147 = sphi 0, %s131
      %s155 = sphi 0, %s157
      %s158 = sphi 0, %s155
      %s159 = sphi 0, %s158
      %s175 = sphi 0, %s159
    $region4: #{_forward.1} parent=1 // loop_header_branch
      %19 = sbr.rel (%p17) target = $region8
    $region5: #{_forward.1} parent=1 // loop_body
      %s21 = ssub.s32 %s16, 1
      %s22 = ssub.s32 %s16, 2
      %s32 = sadd.s32 1, %s25
      %p33 = scmp.ge.s32.totalorder %s32, 3
      %s34 = scalar_select %p33, 0, %s32
      %s35 = sadd.s32 1, %s24
      %s36 = scalar_select %p33, %s35, %s24
      %p37 = scmp.ge.s32.totalorder %s36, 1
      %s38 = scalar_select %p37, 0, %s36
      %s39 = sadd.s32 1, %s23
      %s40 = scalar_select %p37, %s39, %s23
      %p41 = scmp.ge.s32.totalorder %s40, 2
      %s42 = scalar_select %p41, 0, %s40
      %s43 = ssub.s32 %s24, %s38
      %s44 = ssub.s32 %s25, %s34
      %s45 = sor.u32 %s43, %s44
      %p46 = scmp.eq.s32.totalorder %s45, 0
      %s48 = sadd.s32 %s47, 1
      %s49 = scalar_select %p46, %s47, %s48
      %p52 = pneg %p46
      %p53 = scmp.eq.s32.totalorder %s16, 5
      %p54 = por %p52, %p53
      %p55 = scmp.ne.s32.totalorder %s47, %s50
      %p56 = scmp.eq.s32.totalorder %s16, 0
      %p57 = por %p55, %p56
      %p58 = scmp.ne.s32.totalorder %s47, %s50
      %p59 = scmp.eq.s32.totalorder %s21, 5
      %p60 = por %p58, %p59
      %p61 = scmp.ne.s32.totalorder %s50, %s51
      %p62 = scmp.eq.s32.totalorder %s21, 0
      %p63 = por %p61, %p62
      %p64 = scmp.ne.s32.totalorder %s50, %s51
      %p65 = scmp.eq.s32.totalorder %s22, 5
      %p66 = por %p64, %p65
      %p68 = scmp.ne.s32.totalorder %s51, %s67
      %p69 = scmp.eq.s32.totalorder %s22, 0
      %p70 = por %p68, %p69
      %s71 = ssub.s32 %s25, %s34
      %s72 = ssub.s32 %s23, %s42
      %s73 = sor.u32 %s71, %s72
      %p74 = scmp.eq.s32.totalorder %s73, 0
      %s76 = sadd.s32 %s75, 1
      %s77 = scalar_select %p74, %s75, %s76
      %p80 = pneg %p74
      %p81 = scmp.eq.s32.totalorder %s16, 5
      %p82 = por %p80, %p81
      %p83 = scmp.ne.s32.totalorder %s75, %s78
      %p84 = scmp.eq.s32.totalorder %s16, 0
      %p85 = por %p83, %p84
      %p86 = scmp.ne.s32.totalorder %s75, %s78
      %p87 = scmp.eq.s32.totalorder %s21, 5
      %p88 = por %p86, %p87
      %p89 = scmp.ne.s32.totalorder %s78, %s79
      %p90 = scmp.eq.s32.totalorder %s21, 0
      %p91 = por %p89, %p90
      %p92 = scmp.ne.s32.totalorder %s78, %s79
      %p93 = scmp.eq.s32.totalorder %s22, 5
      %p94 = por %p92, %p93
      %p96 = scmp.ne.s32.totalorder %s79, %s95
      %p97 = scmp.eq.s32.totalorder %s22, 0
      %p98 = por %p96, %p97
      %s99 = ssub.s32 %s23, %s42
      %p100 = scmp.eq.s32.totalorder %s99, 0
      %s102 = sadd.s32 %s101, 1
      %s103 = scalar_select %p100, %s101, %s102
      %p106 = pneg %p100
      %p107 = scmp.eq.s32.totalorder %s16, 5
      %p108 = por %p106, %p107
      %p109 = scmp.ne.s32.totalorder %s101, %s104
      %p110 = scmp.eq.s32.totalorder %s16, 0
      %p111 = por %p109, %p110
      %p112 = scmp.ne.s32.totalorder %s101, %s104
      %p113 = scmp.eq.s32.totalorder %s21, 5
      %p114 = por %p112, %p113
      %p115 = scmp.ne.s32.totalorder %s104, %s105
      %p116 = scmp.eq.s32.totalorder %s21, 0
      %p117 = por %p115, %p116
      %p118 = scmp.ne.s32.totalorder %s104, %s105
      %p119 = scmp.eq.s32.totalorder %s22, 5
      %p120 = por %p118, %p119
      %p122 = scmp.ne.s32.totalorder %s105, %s121
      %p123 = scmp.eq.s32.totalorder %s22, 0
      %p124 = por %p122, %p123
      %s125 = ssub.s32 %s23, %s42
      %p126 = scmp.eq.s32.totalorder %s125, 0
      %s128 = sadd.s32 %s127, 1
      %s129 = scalar_select %p126, %s127, %s128
      %p132 = pneg %p126
      %p133 = scmp.eq.s32.totalorder %s16, 5
      %p134 = por %p132, %p133
      %p135 = scmp.ne.s32.totalorder %s127, %s130
      %p136 = scmp.eq.s32.totalorder %s16, 0
      %p137 = por %p135, %p136
      %p138 = scmp.ne.s32.totalorder %s127, %s130
      %p139 = scmp.eq.s32.totalorder %s21, 5
      %p140 = por %p138, %p139
      %p141 = scmp.ne.s32.totalorder %s130, %s131
      %p142 = scmp.eq.s32.totalorder %s21, 0
      %p143 = por %p141, %p142
      %p144 = scmp.ne.s32.totalorder %s130, %s131
      %p145 = scmp.eq.s32.totalorder %s22, 5
      %p146 = por %p144, %p145
      %p148 = scmp.ne.s32.totalorder %s131, %s147
      %p149 = scmp.eq.s32.totalorder %s22, 0
      %p150 = por %p148, %p149
      %s151 = ssub.s32 %s24, %s38
      %s152 = ssub.s32 %s23, %s42
      %s153 = sor.u32 %s151, %s152
      %p154 = scmp.eq.s32.totalorder %s153, 0
      %s156 = sadd.s32 %s155, 1
      %s157 = scalar_select %p154, %s155, %s156
      %p160 = pneg %p154
      %p161 = scmp.eq.s32.totalorder %s16, 5
      %p162 = por %p160, %p161
      %p163 = scmp.ne.s32.totalorder %s155, %s158
      %p164 = scmp.eq.s32.totalorder %s16, 0
      %p165 = por %p163, %p164
      %p166 = scmp.ne.s32.totalorder %s155, %s158
      %p167 = scmp.eq.s32.totalorder %s21, 5
      %p168 = por %p166, %p167
      %p169 = scmp.ne.s32.totalorder %s158, %s159
      %p170 = scmp.eq.s32.totalorder %s21, 0
      %p171 = por %p169, %p170
      %p172 = scmp.ne.s32.totalorder %s158, %s159
      %p173 = scmp.eq.s32.totalorder %s22, 5
      %p174 = por %p172, %p173
      %p176 = scmp.ne.s32.totalorder %s159, %s175
      %p177 = scmp.eq.s32.totalorder %s22, 0
      %p178 = por %p176, %p177
      %p179 = scmp.le.s32.totalorder 1, %s16
      %p180 = scmp.lt.s32.totalorder %s16, 7
      %p181 = pnand %p179, %p180
      %p182 = pneg %p181
      // Predicated region
      $region9: #{_forward.1} parent=5 // pred_check
        _
      $region10: #{_forward.1} parent=5 // pred_check_branch
        %184 = sbr.rel (%p181) target = $region12
      $region11: #{_forward.1} parent=5 // pred_region
        %s185 = ssub.s32 %s16, 1
      $region12: #{_forward.1} parent=5 // pred_fallthru
        _
      %p186 = scmp.lt.s32.totalorder %s16, 6
      // Predicated region
      $region13: #{_forward.1} parent=5 // pred_check
        %p187 = pneg %p186
      $region14: #{_forward.1} parent=5 // pred_check_branch
        %189 = sbr.rel (%p187) target = $region16
      $region15: #{_forward.1} parent=5 // pred_region
        // Predicated region
        $region17: #{_forward.1} parent=15 // pred_check
          %p190 = pneg %p57
        $region18: #{_forward.1} parent=15 // pred_check_branch
          %192 = sbr.rel (%p190) target = $region20
        $region19: #{_forward.1} parent=15 // pred_region
          %s193 = smul.u32 2, %s25
          %p194 = scmp.lt.s32.totalorder %s24, 0
          %s195 = scalar_select %p194, %s24, 0
          %p196 = scmp.lt.s32.totalorder %s193, 5
          %s197 = scalar_select %p196, %s193, 5
          %s198 = smul.addr %s195, 6
          %s199 = sadd.s32 %s197, %s198
          %s200 = smul.addr %s199, 4
          %s201 = scalar_lea.vmem %s0, %s200
          %s202 = smul.u32 2, %s25
        $region20: #{_forward.1} parent=15 // pred_fallthru
          _
        // Predicated region
        $region21: #{_forward.1} parent=15 // pred_check
          %p203 = pneg %p85
        $region22: #{_forward.1} parent=15 // pred_check_branch
          %205 = sbr.rel (%p203) target = $region24
        $region23: #{_forward.1} parent=15 // pred_region
          %s206 = sand.u32 %s75, 1
          %s207 = scalar_lea.sflag [#allocation4], %s206
          %s208 = sand.u32 %s75, 1
          %s209 = smul.addr %s208, 512
          %s210 = scalar_lea.vmem [#allocation3], %s209
          %s211 = smul.u32 32, %s25
          %s212 = smul.u32 4, %s23
          %s214 = ssub.s32 8192, 8192
          %215 = vsyncadd %s207, %s214
          %s216 = smul.addr %s211, 8
          %s217 = sadd.s32 %s212, %s216
          %s218 = smul.addr %s217, 64
          %s219 = scalar_lea.hbm %s1, %s218
          %s220 = sshll.u32 %s210, 4
          %s221 = int_to_ptr.vmem [resolvable:$true] %s220
          %226 = dma.hbm_to_vmem [thread:$0]  %s219, 8192, %s221, %s207, 512, 256, 16
        $region24: #{_forward.1} parent=15 // pred_fallthru
          _
        // Predicated region
        $region25: #{_forward.1} parent=15 // pred_check
          %p227 = pneg %p111
        $region26: #{_forward.1} parent=15 // pred_check_branch
          %229 = sbr.rel (%p227) target = $region28
        $region27: #{_forward.1} parent=15 // pred_region
          %s230 = sand.u32 %s16, 1
          %s231 = scalar_lea.sflag [#allocation6], %s230
          %s232 = sand.u32 %s101, 1
          %s233 = smul.addr %s232, 4
          %s234 = scalar_lea.vmem [#allocation5], %s233
          %s235 = smul.u32 4, %s23
          %s237 = ssub.s32 64, 64
          %238 = vsyncadd %s231, %s237
          %s239 = smul.addr %s235, 16
          %s240 = scalar_lea.hbm %s2, %s239
          %s242 = sshll.u32 %s234, 4
          %s243 = int_to_ptr.vmem [resolvable:$true] %s242
          %245 = dma.hbm_to_vmem [thread:$0]  %s240, 64, %s243, %s231
        $region28: #{_forward.1} parent=15 // pred_fallthru
          _
        // Predicated region
        $region29: #{_forward.1} parent=15 // pred_check
          %p246 = pneg %p137
        $region30: #{_forward.1} parent=15 // pred_check_branch
          %248 = sbr.rel (%p246) target = $region32
        $region31: #{_forward.1} parent=15 // pred_region
          %s249 = sand.u32 %s16, 1
          %s250 = scalar_lea.sflag [#allocation6], %s249
          %s251 = sand.u32 %s127, 1
          %s252 = smul.addr %s251, 512
          %s253 = scalar_lea.vmem [#allocation7], %s252
          %s254 = smul.u32 64, %s23
          %s256 = ssub.s32 8192, 8192
          %257 = vsyncadd %s250, %s256
          %s258 = smul.addr %s254, 128
          %s259 = scalar_lea.hbm %s3, %s258
          %s260 = sshll.u32 %s253, 4
          %s261 = int_to_ptr.vmem [resolvable:$true] %s260
          %266 = dma.hbm_to_vmem [thread:$0]  %s259, 8192, %s261, %s250, 128, 128, 8
        $region32: #{_forward.1} parent=15 // pred_fallthru
          _
      $region16: #{_forward.1} parent=5 // pred_fallthru
        _
      %p267 = scmp.le.s32.totalorder 1, %s16
      %p268 = scmp.lt.s32.totalorder %s16, 7
      %p269 = pnand %p267, %p268
      %p270 = pneg %p269
      // Predicated region
      $region33: #{_forward.1} parent=5 // pred_check
        _
      $region34: #{_forward.1} parent=5 // pred_check_branch
        %272 = sbr.rel (%p269) target = $region36
      $region35: #{_forward.1} parent=5 // pred_region
        %s273 = ssub.s32 %s16, 1
        %s274 = sand.u32 %s78, 1
        %s275 = scalar_lea.sflag [#allocation4], %s274
        %s276 = sand.u32 %s78, 1
        %s277 = smul.addr %s276, 512
        %s278 = scalar_lea.vmem [#allocation3], %s277
        // Predicated region
        $region37: #{_forward.1} parent=35 // pred_check
          %p279 = pneg %p91
        $region38: #{_forward.1} parent=35 // pred_check_branch
          %281 = sbr.rel (%p279) target = $region40
        $region39: #{_forward.1} parent=35 // pred_region
          %282 = dma.done %s275, 8192
        $region40: #{_forward.1} parent=35 // pred_fallthru
          _
        %s283 = sand.u32 %s21, 1
        %s284 = scalar_lea.sflag [#allocation6], %s283
        %s285 = sand.u32 %s104, 1
        %s286 = smul.addr %s285, 4
        %s287 = scalar_lea.vmem [#allocation5], %s286
        // Predicated region
        $region41: #{_forward.1} parent=35 // pred_check
          %p288 = pneg %p117
        $region42: #{_forward.1} parent=35 // pred_check_branch
          %290 = sbr.rel (%p288) target = $region44
        $region43: #{_forward.1} parent=35 // pred_region
          %291 = dma.done %s284, 64
        $region44: #{_forward.1} parent=35 // pred_fallthru
          _
        %s292 = sand.u32 %s21, 1
        %s293 = scalar_lea.sflag [#allocation6], %s292
        %s294 = sand.u32 %s130, 1
        %s295 = smul.addr %s294, 512
        %s296 = scalar_lea.vmem [#allocation7], %s295
        // Predicated region
        $region45: #{_forward.1} parent=35 // pred_check
          %p297 = pneg %p143
        $region46: #{_forward.1} parent=35 // pred_check_branch
          %299 = sbr.rel (%p297) target = $region48
        $region47: #{_forward.1} parent=35 // pred_region
          %300 = dma.done %s293, 8192
        $region48: #{_forward.1} parent=35 // pred_fallthru
          _
        %s301 = smul.u32 2, %s28
        %p302 = scmp.lt.s32.totalorder %s27, 0
        %s303 = scalar_select %p302, %s27, 0
        %p304 = scmp.lt.s32.totalorder %s301, 5
        %s305 = scalar_select %p304, %s301, 5
        %s306 = smul.addr %s303, 6
        %s307 = sadd.s32 %s305, %s306
        %s308 = smul.addr %s307, 4
        %s309 = scalar_lea.vmem %s0, %s308
        %p310 = pneg %p63
        %p311 = pneg %p60
        %s312 = sand.u32 %s78, 1
        %s313 = scalar_lea.sflag [#allocation4], %s312
        %s314 = sand.u32 %s78, 1
        %s315 = smul.addr %s314, 512
        %s316 = scalar_lea.vmem [#allocation3], %s315
        %p317 = pneg %p91
        %p318 = pneg %p88
        %s319 = sand.u32 %s21, 1
        %s320 = scalar_lea.sflag [#allocation6], %s319
        %s321 = sand.u32 %s104, 1
        %s322 = smul.addr %s321, 4
        %s323 = scalar_lea.vmem [#allocation5], %s322
        %p324 = pneg %p117
        %p325 = pneg %p114
        %s326 = sand.u32 %s21, 1
        %s327 = scalar_lea.sflag [#allocation6], %s326
        %s328 = sand.u32 %s130, 1
        %s329 = smul.addr %s328, 512
        %s330 = scalar_lea.vmem [#allocation7], %s329
        %p331 = pneg %p143
        %p332 = pneg %p140
        %p333 = pneg %p171
        %p334 = pneg %p168
        %p335 = scmp.lt.s32.totalorder %s27, 0
        %s336 = scalar_select %p335, %s27, 0
        %p337 = scmp.lt.s32.totalorder %s26, 1
        %s338 = scalar_select %p337, %s26, 1
        %s339 = smul.addr %s336, 2
        %s340 = sadd.s32 %s338, %s339
        %s341 = smul.addr %s340, 8
        %s342 = scalar_lea.vmem %s4, %s341
        %s343 = smul.u32 2, %s28
        %p344 = scmp.lt.s32.totalorder %s27, 0
        %s345 = scalar_select %p344, %s27, 0
        %p346 = scmp.lt.s32.totalorder %s343, 5
        %s347 = scalar_select %p346, %s343, 5
        %s348 = smul.addr %s345, 6
        %s349 = sadd.s32 %s347, %s348
        %s350 = smul.addr %s349, 4
        %s351 = scalar_lea.vmem %s0, %s350
        %s352 = smul.u32 2, %s28
        %s353 = smul.u32 32, %s28
        %s354 = smul.u32 4, %s26
        %s355 = smul.u32 4, %s26
        %s356 = smul.u32 64, %s26
        %p357 = scmp.lt.s32.totalorder %s27, 0
        %s358 = scalar_select %p357, %s27, 0
        %p359 = scmp.lt.s32.totalorder %s26, 1
        %s360 = scalar_select %p359, %s26, 1
        %s361 = smul.addr %s358, 2
        %s362 = sadd.s32 %s360, %s361
        %s363 = smul.addr %s362, 8
        %s364 = scalar_lea.vmem %s4, %s363
        %p365 = scmp.eq.s32.totalorder %s28, 0
        // Predicated region
        $region49: #{_forward.1} parent=35 // pred_check
          %p366 = pneg %p365
        $region50: #{_forward.1} parent=35 // pred_check_branch
          %368 = sbr.rel (%p366) target = $region52
        $region51: #{_forward.1} parent=35 // pred_region
          %369 = vst [vmem:[#allocation2] sm:$0xff] 0.0
          %370 = vst [vmem:[#allocation2 + $0x8] sm:$0xff] 0.0
          %371 = vst [vmem:[#allocation2 + $0x10] sm:$0xff] 0.0
          %372 = vst [vmem:[#allocation2 + $0x18] sm:$0xff] 0.0
        $region52: #{_forward.1} parent=35 // pred_fallthru
          _
        %v373 = vld [vmem:[#allocation2] sm:$0xff]
        %v374 = vld [vmem:[#allocation2 + $0x8] sm:$0xff]
        %v375 = vld [vmem:[#allocation2 + $0x10] sm:$0xff]
        %v376 = vld [vmem:[#allocation2 + $0x18] sm:$0xff]
        %v377 = vld [vmem:[%s351] sm:$0xff]
        %v378 = vld [vmem:[%s278] sm:$0xff]
        %v379 = vld [vmem:[%s278 + $0x8] sm:$0xff]
        %v380 = vld [vmem:[%s278 + $0x10] sm:$0xff]
        %v381 = vld [vmem:[%s278 + $0x18] sm:$0xff]
        %v382 = vld [vmem:[%s278 + $0x20] sm:$0xff]
        %v383 = vld [vmem:[%s278 + $0x28] sm:$0xff]
        %v384 = vld [vmem:[%s278 + $0x30] sm:$0xff]
        %v385 = vld [vmem:[%s278 + $0x38] sm:$0xff]
        %v386 = vld [vmem:[%s278 + $0x40] sm:$0xff]
        %v387 = vld [vmem:[%s278 + $0x48] sm:$0xff]
        %v388 = vld [vmem:[%s278 + $0x50] sm:$0xff]
        %v389 = vld [vmem:[%s278 + $0x58] sm:$0xff]
        %v390 = vld [vmem:[%s278 + $0x60] sm:$0xff]
        %v391 = vld [vmem:[%s278 + $0x68] sm:$0xff]
        %v392 = vld [vmem:[%s278 + $0x70] sm:$0xff]
        %v393 = vld [vmem:[%s278 + $0x78] sm:$0xff]
        %v394 = vld [vmem:[%s278 + $0x80] sm:$0xff]
        %v395 = vld [vmem:[%s278 + $0x88] sm:$0xff]
        %v396 = vld [vmem:[%s278 + $0x90] sm:$0xff]
        %v397 = vld [vmem:[%s278 + $0x98] sm:$0xff]
        %v398 = vld [vmem:[%s278 + $0xa0] sm:$0xff]
        %v399 = vld [vmem:[%s278 + $0xa8] sm:$0xff]
        %v400 = vld [vmem:[%s278 + $0xb0] sm:$0xff]
        %v401 = vld [vmem:[%s278 + $0xb8] sm:$0xff]
        %v402 = vld [vmem:[%s278 + $0xc0] sm:$0xff]
        %v403 = vld [vmem:[%s278 + $0xc8] sm:$0xff]
        %v404 = vld [vmem:[%s278 + $0xd0] sm:$0xff]
        %v405 = vld [vmem:[%s278 + $0xd8] sm:$0xff]
        %v406 = vld [vmem:[%s278 + $0xe0] sm:$0xff]
        %v407 = vld [vmem:[%s278 + $0xe8] sm:$0xff]
        %v408 = vld [vmem:[%s278 + $0xf0] sm:$0xff]
        %v409 = vld [vmem:[%s278 + $0xf8] sm:$0xff]
        %v410 = vld [vmem:[%s278 + $0x100] sm:$0xff]
        %v411 = vld [vmem:[%s278 + $0x108] sm:$0xff]
        %v412 = vld [vmem:[%s278 + $0x110] sm:$0xff]
        %v413 = vld [vmem:[%s278 + $0x118] sm:$0xff]
        %v414 = vld [vmem:[%s278 + $0x120] sm:$0xff]
        %v415 = vld [vmem:[%s278 + $0x128] sm:$0xff]
        %v416 = vld [vmem:[%s278 + $0x130] sm:$0xff]
        %v417 = vld [vmem:[%s278 + $0x138] sm:$0xff]
        %v418 = vld [vmem:[%s278 + $0x140] sm:$0xff]
        %v419 = vld [vmem:[%s278 + $0x148] sm:$0xff]
        %v420 = vld [vmem:[%s278 + $0x150] sm:$0xff]
        %v421 = vld [vmem:[%s278 + $0x158] sm:$0xff]
        %v422 = vld [vmem:[%s278 + $0x160] sm:$0xff]
        %v423 = vld [vmem:[%s278 + $0x168] sm:$0xff]
        %v424 = vld [vmem:[%s278 + $0x170] sm:$0xff]
        %v425 = vld [vmem:[%s278 + $0x178] sm:$0xff]
        %v426 = vld [vmem:[%s278 + $0x180] sm:$0xff]
        %v427 = vld [vmem:[%s278 + $0x188] sm:$0xff]
        %v428 = vld [vmem:[%s278 + $0x190] sm:$0xff]
        %v429 = vld [vmem:[%s278 + $0x198] sm:$0xff]
        %v430 = vld [vmem:[%s278 + $0x1a0] sm:$0xff]
        %v431 = vld [vmem:[%s278 + $0x1a8] sm:$0xff]
        %v432 = vld [vmem:[%s278 + $0x1b0] sm:$0xff]
        %v433 = vld [vmem:[%s278 + $0x1b8] sm:$0xff]
        %v434 = vld [vmem:[%s278 + $0x1c0] sm:$0xff]
        %v435 = vld [vmem:[%s278 + $0x1c8] sm:$0xff]
        %v436 = vld [vmem:[%s278 + $0x1d0] sm:$0xff]
        %v437 = vld [vmem:[%s278 + $0x1d8] sm:$0xff]
        %v438 = vld [vmem:[%s278 + $0x1e0] sm:$0xff]
        %v439 = vld [vmem:[%s278 + $0x1e8] sm:$0xff]
        %v440 = vld [vmem:[%s278 + $0x1f0] sm:$0xff]
        %v441 = vld [vmem:[%s278 + $0x1f8] sm:$0xff]
        %v443 = vunpack.c.l.b16 %v377
        %v444 = vunpack.c.h.b16 %v377
        %v445 = vpack.c.b16 %v443, %v443
        %v446 = vpack.c.b16 %v444, %v444
        %v513 = vunpack.c.l.b16 %v378
        %v514 = vunpack.c.h.b16 %v378
        %v515 = vunpack.c.l.b16 %v379
        %v516 = vunpack.c.h.b16 %v379
        %v517 = vunpack.c.l.b16 %v380
        %v518 = vunpack.c.h.b16 %v380
        %v519 = vunpack.c.l.b16 %v381
        %v520 = vunpack.c.h.b16 %v381
        %v521 = vunpack.c.l.b16 %v382
        %v522 = vunpack.c.h.b16 %v382
        %v523 = vunpack.c.l.b16 %v383
        %v524 = vunpack.c.h.b16 %v383
        %v525 = vunpack.c.l.b16 %v384
        %v526 = vunpack.c.h.b16 %v384
        %v527 = vunpack.c.l.b16 %v385
        %v528 = vunpack.c.h.b16 %v385
        %v529 = vunpack.c.l.b16 %v386
        %v530 = vunpack.c.h.b16 %v386
        %v531 = vunpack.c.l.b16 %v387
        %v532 = vunpack.c.h.b16 %v387
        %v533 = vunpack.c.l.b16 %v388
        %v534 = vunpack.c.h.b16 %v388
        %v535 = vunpack.c.l.b16 %v389
        %v536 = vunpack.c.h.b16 %v389
        %v537 = vunpack.c.l.b16 %v390
        %v538 = vunpack.c.h.b16 %v390
        %v539 = vunpack.c.l.b16 %v391
        %v540 = vunpack.c.h.b16 %v391
        %v541 = vunpack.c.l.b16 %v392
        %v542 = vunpack.c.h.b16 %v392
        %v543 = vunpack.c.l.b16 %v393
        %v544 = vunpack.c.h.b16 %v393
        %v545 = vunpack.c.l.b16 %v394
        %v546 = vunpack.c.h.b16 %v394
        %v547 = vunpack.c.l.b16 %v395
        %v548 = vunpack.c.h.b16 %v395
        %v549 = vunpack.c.l.b16 %v396
        %v550 = vunpack.c.h.b16 %v396
        %v551 = vunpack.c.l.b16 %v397
        %v552 = vunpack.c.h.b16 %v397
        %v553 = vunpack.c.l.b16 %v398
        %v554 = vunpack.c.h.b16 %v398
        %v555 = vunpack.c.l.b16 %v399
        %v556 = vunpack.c.h.b16 %v399
        %v557 = vunpack.c.l.b16 %v400
        %v558 = vunpack.c.h.b16 %v400
        %v559 = vunpack.c.l.b16 %v401
        %v560 = vunpack.c.h.b16 %v401
        %v561 = vunpack.c.l.b16 %v402
        %v562 = vunpack.c.h.b16 %v402
        %v563 = vunpack.c.l.b16 %v403
        %v564 = vunpack.c.h.b16 %v403
        %v565 = vunpack.c.l.b16 %v404
        %v566 = vunpack.c.h.b16 %v404
        %v567 = vunpack.c.l.b16 %v405
        %v568 = vunpack.c.h.b16 %v405
        %v569 = vunpack.c.l.b16 %v406
        %v570 = vunpack.c.h.b16 %v406
        %v571 = vunpack.c.l.b16 %v407
        %v572 = vunpack.c.h.b16 %v407
        %v573 = vunpack.c.l.b16 %v408
        %v574 = vunpack.c.h.b16 %v408
        %v575 = vunpack.c.l.b16 %v409
        %v576 = vunpack.c.h.b16 %v409
        %v577 = vunpack.c.l.b16 %v410
        %v578 = vunpack.c.h.b16 %v410
        %v579 = vunpack.c.l.b16 %v411
        %v580 = vunpack.c.h.b16 %v411
        %v581 = vunpack.c.l.b16 %v412
        %v582 = vunpack.c.h.b16 %v412
        %v583 = vunpack.c.l.b16 %v413
        %v584 = vunpack.c.h.b16 %v413
        %v585 = vunpack.c.l.b16 %v414
        %v586 = vunpack.c.h.b16 %v414
        %v587 = vunpack.c.l.b16 %v415
        %v588 = vunpack.c.h.b16 %v415
        %v589 = vunpack.c.l.b16 %v416
        %v590 = vunpack.c.h.b16 %v416
        %v591 = vunpack.c.l.b16 %v417
        %v592 = vunpack.c.h.b16 %v417
        %v593 = vunpack.c.l.b16 %v418
        %v594 = vunpack.c.h.b16 %v418
        %v595 = vunpack.c.l.b16 %v419
        %v596 = vunpack.c.h.b16 %v419
        %v597 = vunpack.c.l.b16 %v420
        %v598 = vunpack.c.h.b16 %v420
        %v599 = vunpack.c.l.b16 %v421
        %v600 = vunpack.c.h.b16 %v421
        %v601 = vunpack.c.l.b16 %v422
        %v602 = vunpack.c.h.b16 %v422
        %v603 = vunpack.c.l.b16 %v423
        %v604 = vunpack.c.h.b16 %v423
        %v605 = vunpack.c.l.b16 %v424
        %v606 = vunpack.c.h.b16 %v424
        %v607 = vunpack.c.l.b16 %v425
        %v608 = vunpack.c.h.b16 %v425
        %v609 = vunpack.c.l.b16 %v426
        %v610 = vunpack.c.h.b16 %v426
        %v611 = vunpack.c.l.b16 %v427
        %v612 = vunpack.c.h.b16 %v427
        %v613 = vunpack.c.l.b16 %v428
        %v614 = vunpack.c.h.b16 %v428
        %v615 = vunpack.c.l.b16 %v429
        %v616 = vunpack.c.h.b16 %v429
        %v617 = vunpack.c.l.b16 %v430
        %v618 = vunpack.c.h.b16 %v430
        %v619 = vunpack.c.l.b16 %v431
        %v620 = vunpack.c.h.b16 %v431
        %v621 = vunpack.c.l.b16 %v432
        %v622 = vunpack.c.h.b16 %v432
        %v623 = vunpack.c.l.b16 %v433
        %v624 = vunpack.c.h.b16 %v433
        %v625 = vunpack.c.l.b16 %v434
        %v626 = vunpack.c.h.b16 %v434
        %v627 = vunpack.c.l.b16 %v435
        %v628 = vunpack.c.h.b16 %v435
        %v629 = vunpack.c.l.b16 %v436
        %v630 = vunpack.c.h.b16 %v436
        %v631 = vunpack.c.l.b16 %v437
        %v632 = vunpack.c.h.b16 %v437
        %v633 = vunpack.c.l.b16 %v438
        %v634 = vunpack.c.h.b16 %v438
        %v635 = vunpack.c.l.b16 %v439
        %v636 = vunpack.c.h.b16 %v439
        %v637 = vunpack.c.l.b16 %v440
        %v638 = vunpack.c.h.b16 %v440
        %v639 = vunpack.c.l.b16 %v441
        %v640 = vunpack.c.h.b16 %v441
        %v641 = vpack.c.b16 %v517, %v513
        %v642 = vpack.c.b16 %v518, %v514
        %v643 = vpack.c.b16 %v519, %v515
        %v644 = vpack.c.b16 %v520, %v516
        %v645 = vpack.c.b16 %v525, %v521
        %v646 = vpack.c.b16 %v526, %v522
        %v647 = vpack.c.b16 %v527, %v523
        %v648 = vpack.c.b16 %v528, %v524
        %v649 = vpack.c.b16 %v533, %v529
        %v650 = vpack.c.b16 %v534, %v530
        %v651 = vpack.c.b16 %v535, %v531
        %v652 = vpack.c.b16 %v536, %v532
        %v653 = vpack.c.b16 %v541, %v537
        %v654 = vpack.c.b16 %v542, %v538
        %v655 = vpack.c.b16 %v543, %v539
        %v656 = vpack.c.b16 %v544, %v540
        %v657 = vpack.c.b16 %v549, %v545
        %v658 = vpack.c.b16 %v550, %v546
        %v659 = vpack.c.b16 %v551, %v547
        %v660 = vpack.c.b16 %v552, %v548
        %v661 = vpack.c.b16 %v557, %v553
        %v662 = vpack.c.b16 %v558, %v554
        %v663 = vpack.c.b16 %v559, %v555
        %v664 = vpack.c.b16 %v560, %v556
        %v665 = vpack.c.b16 %v565, %v561
        %v666 = vpack.c.b16 %v566, %v562
        %v667 = vpack.c.b16 %v567, %v563
        %v668 = vpack.c.b16 %v568, %v564
        %v669 = vpack.c.b16 %v573, %v569
        %v670 = vpack.c.b16 %v574, %v570
        %v671 = vpack.c.b16 %v575, %v571
        %v672 = vpack.c.b16 %v576, %v572
        %v673 = vpack.c.b16 %v581, %v577
        %v674 = vpack.c.b16 %v582, %v578
        %v675 = vpack.c.b16 %v583, %v579
        %v676 = vpack.c.b16 %v584, %v580
        %v677 = vpack.c.b16 %v589, %v585
        %v678 = vpack.c.b16 %v590, %v586
        %v679 = vpack.c.b16 %v591, %v587
        %v680 = vpack.c.b16 %v592, %v588
        %v681 = vpack.c.b16 %v597, %v593
        %v682 = vpack.c.b16 %v598, %v594
        %v683 = vpack.c.b16 %v599, %v595
        %v684 = vpack.c.b16 %v600, %v596
        %v685 = vpack.c.b16 %v605, %v601
        %v686 = vpack.c.b16 %v606, %v602
        %v687 = vpack.c.b16 %v607, %v603
        %v688 = vpack.c.b16 %v608, %v604
        %v689 = vpack.c.b16 %v613, %v609
        %v690 = vpack.c.b16 %v614, %v610
        %v691 = vpack.c.b16 %v615, %v611
        %v692 = vpack.c.b16 %v616, %v612
        %v693 = vpack.c.b16 %v621, %v617
        %v694 = vpack.c.b16 %v622, %v618
        %v695 = vpack.c.b16 %v623, %v619
        %v696 = vpack.c.b16 %v624, %v620
        %v697 = vpack.c.b16 %v629, %v625
        %v698 = vpack.c.b16 %v630, %v626
        %v699 = vpack.c.b16 %v631, %v627
        %v700 = vpack.c.b16 %v632, %v628
        %v701 = vpack.c.b16 %v637, %v633
        %v702 = vpack.c.b16 %v638, %v634
        %v703 = vpack.c.b16 %v639, %v635
        %v704 = vpack.c.b16 %v640, %v636
        %769 = vmatprep.subr.bf16.mxu0 %v642
        %770 = vmatpush1.bf16.msra.mxu0 %v641
        %771 = vmatprep.subr.bf16.mxu0 %v646
        %772 = vmatpush1.bf16.msra.mxu0 %v645
        %773 = vmatprep.subr.bf16.mxu0 %v650
        %774 = vmatpush1.bf16.msra.mxu0 %v649
        %775 = vmatprep.subr.bf16.mxu0 %v654
        %776 = vmatpush1.bf16.msra.mxu0 %v653
        %777 = vmatprep.subr.bf16.mxu0 %v658
        %778 = vmatpush1.bf16.msra.mxu0 %v657
        %779 = vmatprep.subr.bf16.mxu0 %v662
        %780 = vmatpush1.bf16.msra.mxu0 %v661
        %781 = vmatprep.subr.bf16.mxu0 %v666
        %782 = vmatpush1.bf16.msra.mxu0 %v665
        %783 = vmatprep.subr.bf16.mxu0 %v670
        %784 = vmatpush1.bf16.msra.mxu0 %v669
        %785 = vmatprep.subr.bf16.mxu0 %v674
        %786 = vmatpush1.bf16.msra.mxu0 %v673
        %787 = vmatprep.subr.bf16.mxu0 %v678
        %788 = vmatpush1.bf16.msra.mxu0 %v677
        %789 = vmatprep.subr.bf16.mxu0 %v682
        %790 = vmatpush1.bf16.msra.mxu0 %v681
        %791 = vmatprep.subr.bf16.mxu0 %v686
        %792 = vmatpush1.bf16.msra.mxu0 %v685
        %793 = vmatprep.subr.bf16.mxu0 %v690
        %794 = vmatpush1.bf16.msra.mxu0 %v689
        %795 = vmatprep.subr.bf16.mxu0 %v694
        %796 = vmatpush1.bf16.msra.mxu0 %v693
        %797 = vmatprep.subr.bf16.mxu0 %v698
        %798 = vmatpush1.bf16.msra.mxu0 %v697
        %799 = vmatprep.subr.bf16.mxu0 %v702
        %800 = vmatpush1.bf16.msra.mxu0 %v701
        %801 = vmatprep.mubr.bf16.mxu0 %v446
        %802 = vmatmul.mubr.bf16.gmra.mrb[0].mxu0 %v445
        %v803 = vpop.f32.mrb[0].mxu0
        %v804 = vadd.f32 0.0, %v803
        %v805 = vpop.f32.mrb[0].mxu0
        %v806 = vadd.f32 0.0, %v805
        %v807 = vpop.f32.mrb[0].mxu0
        %v808 = vpop.f32.mrb[0].mxu0
        %809 = vdwg.mxu0
        %810 = vmatprep.subr.bf16.mxu0 %v644
        %811 = vmatpush1.bf16.msra.mxu0 %v643
        %812 = vmatprep.subr.bf16.mxu0 %v648
        %813 = vmatpush1.bf16.msra.mxu0 %v647
        %814 = vmatprep.subr.bf16.mxu0 %v652
        %815 = vmatpush1.bf16.msra.mxu0 %v651
        %816 = vmatprep.subr.bf16.mxu0 %v656
        %817 = vmatpush1.bf16.msra.mxu0 %v655
        %818 = vmatprep.subr.bf16.mxu0 %v660
        %819 = vmatpush1.bf16.msra.mxu0 %v659
        %820 = vmatprep.subr.bf16.mxu0 %v664
        %821 = vmatpush1.bf16.msra.mxu0 %v663
        %822 = vmatprep.subr.bf16.mxu0 %v668
        %823 = vmatpush1.bf16.msra.mxu0 %v667
        %824 = vmatprep.subr.bf16.mxu0 %v672
        %825 = vmatpush1.bf16.msra.mxu0 %v671
        %826 = vmatprep.subr.bf16.mxu0 %v676
        %827 = vmatpush1.bf16.msra.mxu0 %v675
        %828 = vmatprep.subr.bf16.mxu0 %v680
        %829 = vmatpush1.bf16.msra.mxu0 %v679
        %830 = vmatprep.subr.bf16.mxu0 %v684
        %831 = vmatpush1.bf16.msra.mxu0 %v683
        %832 = vmatprep.subr.bf16.mxu0 %v688
        %833 = vmatpush1.bf16.msra.mxu0 %v687
        %834 = vmatprep.subr.bf16.mxu0 %v692
        %835 = vmatpush1.bf16.msra.mxu0 %v691
        %836 = vmatprep.subr.bf16.mxu0 %v696
        %837 = vmatpush1.bf16.msra.mxu0 %v695
        %838 = vmatprep.subr.bf16.mxu0 %v700
        %839 = vmatpush1.bf16.msra.mxu0 %v699
        %840 = vmatprep.subr.bf16.mxu0 %v704
        %841 = vmatpush1.bf16.msra.mxu0 %v703
        %842 = vmatprep.mubr.bf16.mxu0 %v446
        %843 = vmatmul.mubr.bf16.gmra.mrb[0].mxu0 %v445
        %v844 = vpop.f32.mrb[0].mxu0
        %v845 = vadd.f32 0.0, %v844
        %v846 = vpop.f32.mrb[0].mxu0
        %v847 = vadd.f32 0.0, %v846
        %v848 = vpop.f32.mrb[0].mxu0
        %v849 = vpop.f32.mrb[0].mxu0
        %850 = vdwg.mxu0
        %v851 = vadd.f32 %v373, %v804
        %v852 = vadd.f32 %v374, %v806
        %v853 = vadd.f32 %v375, %v845
        %v854 = vadd.f32 %v376, %v847
        %855 = vst [vmem:[#allocation2] sm:$0xff] %v851
        %856 = vst [vmem:[#allocation2 + $0x8] sm:$0xff] %v852
        %857 = vst [vmem:[#allocation2 + $0x10] sm:$0xff] %v853
        %858 = vst [vmem:[#allocation2 + $0x18] sm:$0xff] %v854
        %p859 = scmp.eq.s32.totalorder %s28, 2
        // Predicated region
        $region53: #{_forward.1} parent=35 // pred_check
          %p860 = pneg %p859
        $region54: #{_forward.1} parent=35 // pred_check_branch
          %862 = sbr.rel (%p860) target = $region56
        $region55: #{_forward.1} parent=35 // pred_region
          %v863 = vld [vmem:[#allocation2] sm:$0xff]
          %v864 = vld [vmem:[#allocation2 + $0x8] sm:$0xff]
          %v865 = vld [vmem:[#allocation2 + $0x10] sm:$0xff]
          %v866 = vld [vmem:[#allocation2 + $0x18] sm:$0xff]
          %v867 = vld [vmem:[%s287] sm:$0xf]
          %v869 = vlaneseq
          %v870 = vshrl.u32 %v869, 7
          %v871 = vsub.s32 0, %v870
          %v872 = vrot.slane %v867, %v871
          %v873 = vlaneseq
          %v874 = vshrl.u32 %v873, 7
          %v875 = vsub.s32 1, %v874
          %v876 = vrot.slane %v867, %v875
          %v877 = vlaneseq
          %v878 = vshrl.u32 %v877, 7
          %v879 = vsub.s32 2, %v878
          %v880 = vrot.slane %v867, %v879
          %v881 = vlaneseq
          %v882 = vshrl.u32 %v881, 7
          %v883 = vsub.s32 3, %v882
          %v884 = vrot.slane %v867, %v883
          %v889 = vadd.f32 %v863, %v872
          %v890 = vadd.f32 %v864, %v876
          %v891 = vadd.f32 %v865, %v880
          %v892 = vadd.f32 %v866, %v884
          %v893 = vmax.f32 %v889, 0.0
          %v894 = vmax.f32 %v890, 0.0
          %v895 = vmax.f32 %v891, 0.0
          %v896 = vmax.f32 %v892, 0.0
          %v897 = vld [vmem:[%s296] sm:$0xff]
          %v898 = vld [vmem:[%s296 + $0x8] sm:$0xff]
          %v899 = vld [vmem:[%s296 + $0x10] sm:$0xff]
          %v900 = vld [vmem:[%s296 + $0x18] sm:$0xff]
          %v901 = vld [vmem:[%s296 + $0x20] sm:$0xff]
          %v902 = vld [vmem:[%s296 + $0x28] sm:$0xff]
          %v903 = vld [vmem:[%s296 + $0x30] sm:$0xff]
          %v904 = vld [vmem:[%s296 + $0x38] sm:$0xff]
          %v905 = vld [vmem:[%s296 + $0x40] sm:$0xff]
          %v906 = vld [vmem:[%s296 + $0x48] sm:$0xff]
          %v907 = vld [vmem:[%s296 + $0x50] sm:$0xff]
          %v908 = vld [vmem:[%s296 + $0x58] sm:$0xff]
          %v909 = vld [vmem:[%s296 + $0x60] sm:$0xff]
          %v910 = vld [vmem:[%s296 + $0x68] sm:$0xff]
          %v911 = vld [vmem:[%s296 + $0x70] sm:$0xff]
          %v912 = vld [vmem:[%s296 + $0x78] sm:$0xff]
          %v913 = vld [vmem:[%s296 + $0x80] sm:$0xff]
          %v914 = vld [vmem:[%s296 + $0x88] sm:$0xff]
          %v915 = vld [vmem:[%s296 + $0x90] sm:$0xff]
          %v916 = vld [vmem:[%s296 + $0x98] sm:$0xff]
          %v917 = vld [vmem:[%s296 + $0xa0] sm:$0xff]
          %v918 = vld [vmem:[%s296 + $0xa8] sm:$0xff]
          %v919 = vld [vmem:[%s296 + $0xb0] sm:$0xff]
          %v920 = vld [vmem:[%s296 + $0xb8] sm:$0xff]
          %v921 = vld [vmem:[%s296 + $0xc0] sm:$0xff]
          %v922 = vld [vmem:[%s296 + $0xc8] sm:$0xff]
          %v923 = vld [vmem:[%s296 + $0xd0] sm:$0xff]
          %v924 = vld [vmem:[%s296 + $0xd8] sm:$0xff]
          %v925 = vld [vmem:[%s296 + $0xe0] sm:$0xff]
          %v926 = vld [vmem:[%s296 + $0xe8] sm:$0xff]
          %v927 = vld [vmem:[%s296 + $0xf0] sm:$0xff]
          %v928 = vld [vmem:[%s296 + $0xf8] sm:$0xff]
          %v929 = vld [vmem:[%s296 + $0x100] sm:$0xff]
          %v930 = vld [vmem:[%s296 + $0x108] sm:$0xff]
          %v931 = vld [vmem:[%s296 + $0x110] sm:$0xff]
          %v932 = vld [vmem:[%s296 + $0x118] sm:$0xff]
          %v933 = vld [vmem:[%s296 + $0x120] sm:$0xff]
          %v934 = vld [vmem:[%s296 + $0x128] sm:$0xff]
          %v935 = vld [vmem:[%s296 + $0x130] sm:$0xff]
          %v936 = vld [vmem:[%s296 + $0x138] sm:$0xff]
          %v937 = vld [vmem:[%s296 + $0x140] sm:$0xff]
          %v938 = vld [vmem:[%s296 + $0x148] sm:$0xff]
          %v939 = vld [vmem:[%s296 + $0x150] sm:$0xff]
          %v940 = vld [vmem:[%s296 + $0x158] sm:$0xff]
          %v941 = vld [vmem:[%s296 + $0x160] sm:$0xff]
          %v942 = vld [vmem:[%s296 + $0x168] sm:$0xff]
          %v943 = vld [vmem:[%s296 + $0x170] sm:$0xff]
          %v944 = vld [vmem:[%s296 + $0x178] sm:$0xff]
          %v945 = vld [vmem:[%s296 + $0x180] sm:$0xff]
          %v946 = vld [vmem:[%s296 + $0x188] sm:$0xff]
          %v947 = vld [vmem:[%s296 + $0x190] sm:$0xff]
          %v948 = vld [vmem:[%s296 + $0x198] sm:$0xff]
          %v949 = vld [vmem:[%s296 + $0x1a0] sm:$0xff]
          %v950 = vld [vmem:[%s296 + $0x1a8] sm:$0xff]
          %v951 = vld [vmem:[%s296 + $0x1b0] sm:$0xff]
          %v952 = vld [vmem:[%s296 + $0x1b8] sm:$0xff]
          %v953 = vld [vmem:[%s296 + $0x1c0] sm:$0xff]
          %v954 = vld [vmem:[%s296 + $0x1c8] sm:$0xff]
          %v955 = vld [vmem:[%s296 + $0x1d0] sm:$0xff]
          %v956 = vld [vmem:[%s296 + $0x1d8] sm:$0xff]
          %v957 = vld [vmem:[%s296 + $0x1e0] sm:$0xff]
          %v958 = vld [vmem:[%s296 + $0x1e8] sm:$0xff]
          %v959 = vld [vmem:[%s296 + $0x1f0] sm:$0xff]
          %v960 = vld [vmem:[%s296 + $0x1f8] sm:$0xff]
          %961 = vmatprep.subr.mxu0 0.0
          %962 = vmatpush1.msra.mxu0 %v897
          %963 = vmatprep.subr.mxu0 0.0
          %964 = vmatpush1.msra.mxu0 %v898
          %965 = vmatprep.subr.mxu0 0.0
          %966 = vmatpush1.msra.mxu0 %v899
          %967 = vmatprep.subr.mxu0 0.0
          %968 = vmatpush1.msra.mxu0 %v900
          %969 = vmatprep.subr.mxu0 0.0
          %970 = vmatpush1.msra.mxu0 %v901
          %971 = vmatprep.subr.mxu0 0.0
          %972 = vmatpush1.msra.mxu0 %v902
          %973 = vmatprep.subr.mxu0 0.0
          %974 = vmatpush1.msra.mxu0 %v903
          %975 = vmatprep.subr.mxu0 0.0
          %976 = vmatpush1.msra.mxu0 %v904
          %977 = vmatprep.subr.mxu0 0.0
          %978 = vmatpush1.msra.mxu0 %v905
          %979 = vmatprep.subr.mxu0 0.0
          %980 = vmatpush1.msra.mxu0 %v906
          %981 = vmatprep.subr.mxu0 0.0
          %982 = vmatpush1.msra.mxu0 %v907
          %983 = vmatprep.subr.mxu0 0.0
          %984 = vmatpush1.msra.mxu0 %v908
          %985 = vmatprep.subr.mxu0 0.0
          %986 = vmatpush1.msra.mxu0 %v909
          %987 = vmatprep.subr.mxu0 0.0
          %988 = vmatpush1.msra.mxu0 %v910
          %989 = vmatprep.subr.mxu0 0.0
          %990 = vmatpush1.msra.mxu0 %v911
          %991 = vmatprep.subr.mxu0 0.0
          %992 = vmatpush1.msra.mxu0 %v912
          %993 = vmatprep.subr.mxu0 0.0
          %994 = vmatpush1.msra.mxu0 %v913
          %995 = vmatprep.subr.mxu0 0.0
          %996 = vmatpush1.msra.mxu0 %v914
          %997 = vmatprep.subr.mxu0 0.0
          %998 = vmatpush1.msra.mxu0 %v915
          %999 = vmatprep.subr.mxu0 0.0
          %1000 = vmatpush1.msra.mxu0 %v916
          %1001 = vmatprep.subr.mxu0 0.0
          %1002 = vmatpush1.msra.mxu0 %v917
          %1003 = vmatprep.subr.mxu0 0.0
          %1004 = vmatpush1.msra.mxu0 %v918
          %1005 = vmatprep.subr.mxu0 0.0
          %1006 = vmatpush1.msra.mxu0 %v919
          %1007 = vmatprep.subr.mxu0 0.0
          %1008 = vmatpush1.msra.mxu0 %v920
          %1009 = vmatprep.subr.mxu0 0.0
          %1010 = vmatpush1.msra.mxu0 %v921
          %1011 = vmatprep.subr.mxu0 0.0
          %1012 = vmatpush1.msra.mxu0 %v922
          %1013 = vmatprep.subr.mxu0 0.0
          %1014 = vmatpush1.msra.mxu0 %v923
          %1015 = vmatprep.subr.mxu0 0.0
          %1016 = vmatpush1.msra.mxu0 %v924
          %1017 = vmatprep.subr.mxu0 0.0
          %1018 = vmatpush1.msra.mxu0 %v925
          %1019 = vmatprep.subr.mxu0 0.0
          %1020 = vmatpush1.msra.mxu0 %v926
          %1021 = vmatprep.subr.mxu0 0.0
          %1022 = vmatpush1.msra.mxu0 %v927
          %1023 = vmatprep.subr.mxu0 0.0
          %1024 = vmatpush1.msra.mxu0 %v928
          %1025 = vmatprep.mubr.f32.mxu0 %v894
          %1026 = vmatmul.mubr.f32.gmra.mrb[0].mxu0 %v893
          %v1027 = vpop.f32.mrb[0].mxu0
          %v1028 = vadd.f32 0.0, %v1027
          %v1029 = vpop.f32.mrb[0].mxu0
          %1030 = vdwg.mxu0
          %1031 = vmatprep.subr.mxu0 0.0
          %1032 = vmatpush1.msra.mxu0 %v929
          %1033 = vmatprep.subr.mxu0 0.0
          %1034 = vmatpush1.msra.mxu0 %v930
          %1035 = vmatprep.subr.mxu0 0.0
          %1036 = vmatpush1.msra.mxu0 %v931
          %1037 = vmatprep.subr.mxu0 0.0
          %1038 = vmatpush1.msra.mxu0 %v932
          %1039 = vmatprep.subr.mxu0 0.0
          %1040 = vmatpush1.msra.mxu0 %v933
          %1041 = vmatprep.subr.mxu0 0.0
          %1042 = vmatpush1.msra.mxu0 %v934
          %1043 = vmatprep.subr.mxu0 0.0
          %1044 = vmatpush1.msra.mxu0 %v935
          %1045 = vmatprep.subr.mxu0 0.0
          %1046 = vmatpush1.msra.mxu0 %v936
          %1047 = vmatprep.subr.mxu0 0.0
          %1048 = vmatpush1.msra.mxu0 %v937
          %1049 = vmatprep.subr.mxu0 0.0
          %1050 = vmatpush1.msra.mxu0 %v938
          %1051 = vmatprep.subr.mxu0 0.0
          %1052 = vmatpush1.msra.mxu0 %v939
          %1053 = vmatprep.subr.mxu0 0.0
          %1054 = vmatpush1.msra.mxu0 %v940
          %1055 = vmatprep.subr.mxu0 0.0
          %1056 = vmatpush1.msra.mxu0 %v941
          %1057 = vmatprep.subr.mxu0 0.0
          %1058 = vmatpush1.msra.mxu0 %v942
          %1059 = vmatprep.subr.mxu0 0.0
          %1060 = vmatpush1.msra.mxu0 %v943
          %1061 = vmatprep.subr.mxu0 0.0
          %1062 = vmatpush1.msra.mxu0 %v944
          %1063 = vmatprep.subr.mxu0 0.0
          %1064 = vmatpush1.msra.mxu0 %v945
          %1065 = vmatprep.subr.mxu0 0.0
          %1066 = vmatpush1.msra.mxu0 %v946
          %1067 = vmatprep.subr.mxu0 0.0
          %1068 = vmatpush1.msra.mxu0 %v947
          %1069 = vmatprep.subr.mxu0 0.0
          %1070 = vmatpush1.msra.mxu0 %v948
          %1071 = vmatprep.subr.mxu0 0.0
          %1072 = vmatpush1.msra.mxu0 %v949
          %1073 = vmatprep.subr.mxu0 0.0
          %1074 = vmatpush1.msra.mxu0 %v950
          %1075 = vmatprep.subr.mxu0 0.0
          %1076 = vmatpush1.msra.mxu0 %v951
          %1077 = vmatprep.subr.mxu0 0.0
          %1078 = vmatpush1.msra.mxu0 %v952
          %1079 = vmatprep.subr.mxu0 0.0
          %1080 = vmatpush1.msra.mxu0 %v953
          %1081 = vmatprep.subr.mxu0 0.0
          %1082 = vmatpush1.msra.mxu0 %v954
          %1083 = vmatprep.subr.mxu0 0.0
          %1084 = vmatpush1.msra.mxu0 %v955
          %1085 = vmatprep.subr.mxu0 0.0
          %1086 = vmatpush1.msra.mxu0 %v956
          %1087 = vmatprep.subr.mxu0 0.0
          %1088 = vmatpush1.msra.mxu0 %v957
          %1089 = vmatprep.subr.mxu0 0.0
          %1090 = vmatpush1.msra.mxu0 %v958
          %1091 = vmatprep.subr.mxu0 0.0
          %1092 = vmatpush1.msra.mxu0 %v959
          %1093 = vmatprep.subr.mxu0 0.0
          %1094 = vmatpush1.msra.mxu0 %v960
          %1095 = vmatprep.mubr.f32.mxu0 %v896
          %1096 = vmatmul.mubr.f32.gmra.mrb[0].mxu0 %v895
          %v1097 = vpop.f32.mrb[0].mxu0
          %v1098 = vadd.f32 %v1028, %v1097
          %v1099 = vpop.f32.mrb[0].mxu0
          %1100 = vdwg.mxu0
          %1101 = vst [vmem:[%s364] sm:$0xff] %v1098
        $region56: #{_forward.1} parent=35 // pred_fallthru
          _
        %p1102 = scmp.lt.s32.totalorder %s27, 0
        %s1103 = scalar_select %p1102, %s27, 0
        %p1104 = scmp.lt.s32.totalorder %s26, 1
        %s1105 = scalar_select %p1104, %s26, 1
        %s1106 = smul.addr %s1103, 2
        %s1107 = sadd.s32 %s1105, %s1106
        %s1108 = smul.addr %s1107, 8
        %s1109 = scalar_lea.vmem %s4, %s1108
        // Predicated region
        $region57: #{_forward.1} parent=35 // pred_check
          %p1110 = pneg %p168
        $region58: #{_forward.1} parent=35 // pred_check_branch
          %1112 = sbr.rel (%p1110) target = $region60
        $region59: #{_forward.1} parent=35 // pred_region
          _
        $region60: #{_forward.1} parent=35 // pred_fallthru
          _
      $region36: #{_forward.1} parent=5 // pred_fallthru
        _
      %p1113 = scmp.le.s32.totalorder 2, %s16
      // Predicated region
      $region61: #{_forward.1} parent=5 // pred_check
        %p1114 = pneg %p1113
      $region62: #{_forward.1} parent=5 // pred_check_branch
        %1116 = sbr.rel (%p1114) target = $region64
      $region63: #{_forward.1} parent=5 // pred_region
        %s1117 = ssub.s32 %s16, 2
        // Predicated region
        $region65: #{_forward.1} parent=63 // pred_check
          %p1118 = pneg %p174
        $region66: #{_forward.1} parent=63 // pred_check_branch
          %1120 = sbr.rel (%p1118) target = $region68
        $region67: #{_forward.1} parent=63 // pred_region
          %p1121 = scmp.lt.s32.totalorder %s30, 0
          %s1122 = scalar_select %p1121, %s30, 0
          %p1123 = scmp.lt.s32.totalorder %s29, 1
          %s1124 = scalar_select %p1123, %s29, 1
          %s1125 = smul.addr %s1122, 2
          %s1126 = sadd.s32 %s1124, %s1125
          %s1127 = smul.addr %s1126, 8
          %s1128 = scalar_lea.vmem %s4, %s1127
        $region68: #{_forward.1} parent=63 // pred_fallthru
          _
      $region64: #{_forward.1} parent=5 // pred_fallthru
        _
    $region6: #{_forward.1} parent=1 // loop_footer
      %s20 = sadd.s32 1, %s16
    $region7: #{_forward.1} parent=1 // loop_footer_branch
      %15 = sbr.rel target = $region3
    $region8: #{_forward.1} parent=1 // loop_exit
      _
    %1129 = vsyncpa [#allocation4], 1
    %s1130 = scalar_lea.sflag [#allocation4], 1
    %1131 = vsyncpa %s1130, 1
    %1132 = vsyncpa [#allocation6], 1
    %s1133 = scalar_lea.sflag [#allocation6], 1
    %1134 = vsyncpa %s1133, 1

</llo_original>
